<compile_context>
chip_gen: v5e
topology: v5e:2x2
jax: 0.10.0
libtpu: 0.0.40
codegen_flags: <defaults>
</compile_context>

<pallas_src>
import functools

import jax
import jax.numpy as jnp
from jax.experimental import pallas as pl
from jax.experimental.pallas import tpu as pltpu


# ----------------------------------------------------------------------------
# Kernel
# ----------------------------------------------------------------------------
def _ls_ce_sum_kernel(pred_ref, tgt_ref, out_ref, acc_ref, *,
                      w_target, w_offset, n_valid, tile_n, steps,
                      num_classes, needs_mask):
    """Accumulates sum_r [ -(conf-off)*logp[r,t_r] - off*sum_c logp[r,c] ]."""
    i = pl.program_id(1)          # row-tile reduction axis ("arbitrary")

    @pl.when(i == 0)
    def _init():
        acc_ref[...] = jnp.zeros_like(acc_ref)

    pred = pred_ref[...].astype(jnp.float32)             # (tile_n, C)
    tgt = tgt_ref[...]                                    # (tile_n, 1) int32

    # Numerically stable log-softmax pieces.  `pred` is the only (tile_n, C)
    # f32 tensor that gets swept (max / exp-sum / plain sum / target gather);
    # no `shifted` tensor is materialized.
    m = jnp.max(pred, axis=-1, keepdims=True)                          # (tile_n, 1)
    sum_exp = jnp.sum(jnp.exp(pred - m), axis=-1, keepdims=True)       # (tile_n, 1)
    lse = jnp.log(sum_exp)                                             # (tile_n, 1)
    sum_pred = jnp.sum(pred, axis=-1, keepdims=True)                   # (tile_n, 1)

    # Target gather as a masked lane reduce directly over `pred` (no one-hot
    # matmul; a single (1, C) lane iota broadcasts against (tile_n, 1) targets).
    col_ids = jax.lax.broadcasted_iota(jnp.int32, (1, num_classes), 1)
    pred_t = jnp.sum(jnp.where(col_ids == tgt, pred, 0.0),
                     axis=-1, keepdims=True)                           # (tile_n, 1)

    # Algebraic label-smoothing decomposition (no materialized true_dist):
    #   per_row       = -(conf - off) * logp[t] - off * sum_c logp[c]
    #   logp[t]       = pred[t] - m - lse
    #   sum_c logp[c] = sum_c pred[c] - C * (m + lse)
    logp_t = pred_t - m - lse
    sum_logp = sum_pred - jnp.float32(num_classes) * (m + lse)
    per_row = (-jnp.float32(w_target) * logp_t
               - jnp.float32(w_offset) * sum_logp)                     # (tile_n, 1)

    if needs_mask:
        # Only emitted for the (tiny, explicitly zero-padded) ragged-tail call;
        # the main call is exactly tile-aligned and skips this work entirely.
        row0 = (pl.program_id(0) * steps + i) * tile_n
        row_ids = jax.lax.broadcasted_iota(jnp.int32, (tile_n, 1), 0) + row0
        per_row = jnp.where(row_ids < n_valid, per_row, 0.0)

    # Vector-wise accumulation; the cross-sublane reduce and scalar extraction
    # happen only once, in the finalize step.
    acc_ref[...] = acc_ref[...] + per_row

    @pl.when(i == pl.num_programs(1) - 1)
    def _finalize():
        # Lane-dense dummy output block; the wrapper reads element [s, 0, 0].
        out_ref[...] = jnp.full(out_ref.shape, jnp.sum(acc_ref[...]),
                                dtype=jnp.float32)


# ----------------------------------------------------------------------------
# Wrapper helpers
# ----------------------------------------------------------------------------
def _tpu_info():
    try:
        return pltpu.get_tpu_info()
    except Exception:
        return None


def _vmem_capacity_bytes(info):
    if info is not None:
        v = getattr(info, "vmem_capacity_bytes", None)
        if v:
            return int(v)
    return 64 * 1024 * 1024            # conservative: v7x per-TensorCore VMEM


def _num_tensorcores(info):
    """TensorCores per chip: 2 on v7x, 1 on v5e/v6e."""
    if info is not None:
        for attr in ("num_cores", "num_tensorcores", "tensorcores_per_chip",
                     "cores_per_chip", "num_cores_per_chip"):
            v = getattr(info, attr, None)
            if isinstance(v, int) and v > 0:
                return int(v)
    try:
        kind = jax.devices()[0].device_kind.lower()
        if "v7" in kind or "7x" in kind:
            return 2
    except Exception:
        pass
    return 1


def _round_up(x, m):
    return ((x + m - 1) // m) * m


def _ce_partial_sum(pred, target2d, *, n_valid, tile_n, num_shards, steps,
                    w_target, w_offset, vmem_limit, needs_mask):
    """Sum of per-row smoothed-CE over the rows covered by the grid."""
    _, c = pred.shape
    rows = num_shards * steps * tile_n
    itemsize = jnp.dtype(pred.dtype).itemsize

    kernel = functools.partial(
        _ls_ce_sum_kernel,
        w_target=w_target, w_offset=w_offset, n_valid=n_valid,
        tile_n=tile_n, steps=steps, num_classes=c, needs_mask=needs_mask)

    cost = pl.CostEstimate(
        flops=8 * rows * c,
        transcendentals=rows * c,
        bytes_accessed=rows * c * itemsize + rows * 4 + num_shards * 8 * 128 * 4)

    partials = pl.pallas_call(
        kernel,
        out_shape=jax.ShapeDtypeStruct((num_shards, 8, 128), jnp.float32),
        grid_spec=pltpu.PrefetchScalarGridSpec(
            num_scalar_prefetch=0,
            grid=(num_shards, steps),
            in_specs=[
                # TODO(synk): if profiling on v7x shows exposed DMA at the
                # capped tile size, add pipeline_mode=pl.Buffered(3) here.
                pl.BlockSpec((tile_n, c), lambda s, i: (s * steps + i, 0)),
                pl.BlockSpec((tile_n, 1), lambda s, i: (s * steps + i, 0)),
            ],
            out_specs=pl.BlockSpec((1, 8, 128), lambda s, i: (s, 0, 0)),
            scratch_shapes=[pltpu.VMEM((tile_n, 1), jnp.float32)],
        ),
        compiler_params=pltpu.CompilerParams(
            dimension_semantics=("parallel", "arbitrary"),
            vmem_limit_bytes=vmem_limit,
        ),
        cost_estimate=cost,
    )(pred, target2d)
    return jnp.sum(partials[:, 0, 0])


_TILE_ROW_CAP = 512   # streaming kernels hit ~85% of HBM roofline at 512-1024 rows


def label_smoothing_ce_loss(pred, target, classes, smoothing=0.1, *,
                            tile_rows=None):
    assert pred.ndim == 2 and pred.shape[-1] == classes
    assert classes > 1, "smoothing / (classes - 1) undefined for classes == 1"
    n, c = pred.shape
    confidence = 1.0 - smoothing
    off = smoothing / (classes - 1)
    w_target = confidence - off      # weight on logp[target]
    w_offset = off                   # weight on sum_c logp[c]

    info = _tpu_info()
    vmem_cap = _vmem_capacity_bytes(info)
    num_cores = _num_tensorcores(info)

    itemsize = jnp.dtype(pred.dtype).itemsize   # bf16 inputs halve HBM reads
    # Tile sized from the f32 working set (double-buffered input + ~3 f32
    # temporaries), then capped at the bandwidth sweet spot.
    # TODO(synk): for huge vocabularies where even 8 rows exceed the budget,
    # additionally tile the class axis with an online (flash-style) max/LSE.
    bytes_per_row = c * (2 * itemsize + 3 * 4)
    rows_fit = max(8, ((vmem_cap // 3) // max(1, bytes_per_row)) // 8 * 8)
    tile_n = min(_TILE_ROW_CAP, rows_fit, _round_up(n, 8))
    if tile_rows is not None:
        tile_n = min(tile_n, max(8, _round_up(tile_rows, 8)))
    tile_n = max(8, tile_n)

    vmem_limit = int(min(vmem_cap,
                         max(32 << 20,
                             tile_n * c * (2 * itemsize + 3 * 4) + (4 << 20))))

    target2d = target.astype(jnp.int32).reshape(n, 1)

    num_full = n // tile_n          # exactly tile-aligned prefix (no pad, no mask)
    rem = n - num_full * tile_n     # ragged tail (< tile_n rows)

    total = jnp.float32(0.0)

    if num_full >= 1:
        # Shard across the 2 v7x TensorCores only when it does not force
        # padding (even tile count); serial/no-op on single-TC chips.
        if num_cores >= 2 and num_full >= 2 and num_full % 2 == 0:
            num_shards = 2
        else:
            num_shards = 1
        steps = num_full // num_shards
        total = total + _ce_partial_sum(
            pred, target2d,
            n_valid=num_full * tile_n, tile_n=tile_n,
            num_shards=num_shards, steps=steps,
            w_target=w_target, w_offset=w_offset,
            vmem_limit=vmem_limit, needs_mask=False)

    if rem > 0:
        # Ragged tail epilogue: slice + zero-pad only `rem` (< tile_n) rows
        # instead of a full-tensor jnp.pad copy of the logits.
        tail_rows = _round_up(rem, 8)
        pad = tail_rows - rem
        tail_pred = pred[num_full * tile_n:]
        tail_tgt = target2d[num_full * tile_n:]
        if pad:
            tail_pred = jnp.pad(tail_pred, ((0, pad), (0, 0)))
            tail_tgt = jnp.pad(tail_tgt, ((0, pad), (0, 0)))
        total = total + _ce_partial_sum(
            tail_pred, tail_tgt,
            n_valid=rem, tile_n=tail_rows,
            num_shards=1, steps=1,
            w_target=w_target, w_offset=w_offset,
            vmem_limit=vmem_limit, needs_mask=(pad > 0))

    return total / jnp.float32(n)


# ----------------------------------------------------------------------------
# Reference + self-test
# ----------------------------------------------------------------------------
def _reference(pred, target, classes, smoothing):
    confidence = 1.0 - smoothing
    logp = jax.nn.log_softmax(pred.astype(jnp.float32), axis=-1)
    n, c = pred.shape
    true_dist = jnp.full((n, c), smoothing / (classes - 1), dtype=jnp.float32)
    true_dist = true_dist.at[jnp.arange(n), target].set(confidence)
    return jnp.mean(jnp.sum(-true_dist * logp, axis=-1))


if __name__ == "__main__":
    key = jax.random.PRNGKey(0)
    smoothing = 0.1
    k1, k2, k3, k4 = jax.random.split(key, 4)

    # Case 1: small single-tile shape (matches the module's toy usage).
    N, C = 8, 32
    pred = jax.random.normal(k1, (N, C), dtype=jnp.float32)
    target = jax.random.randint(k2, (N,), 0, C, dtype=jnp.int32)
    loss = jax.block_until_ready(
        label_smoothing_ce_loss(pred, target, classes=C, smoothing=smoothing))
    ref = _reference(pred, target, C, smoothing)
    assert jnp.allclose(loss, ref, atol=1e-5, rtol=1e-5), (loss, ref)

    # Case 2: exercises the tiled main path + ragged-tail epilogue path.
    N2, C2 = 100, 128
    pred2 = jax.random.normal(k3, (N2, C2), dtype=jnp.float32)
    target2 = jax.random.randint(k4, (N2,), 0, C2, dtype=jnp.int32)
    loss2 = jax.block_until_ready(
        label_smoothing_ce_loss(pred2, target2, classes=C2,
                                smoothing=smoothing, tile_rows=16))
    ref2 = _reference(pred2, target2, C2, smoothing)
    assert jnp.allclose(loss2, ref2, atol=1e-5, rtol=1e-5), (loss2, ref2)

    print("KERNEL_OK")
</pallas_src>

<mosaic_0001>
module attributes {stable_mosaic.version = 11 : i64} {
  func.func @_ls_ce_sum_kernel(%arg0: i32, %arg1: i32, %arg2: memref<8x32xf32, #tpu.memory_space<vmem>>, %arg3: memref<8x1xi32, #tpu.memory_space<vmem>>, %arg4: memref<1x8x128xf32, #tpu.memory_space<vmem>>, %arg5: memref<8x1xf32, #tpu.memory_space<vmem>>) attributes {dimension_semantics = [#tpu.dimension_semantics<parallel>, #tpu.dimension_semantics<arbitrary>], iteration_bounds = array<i64: 1, 1>, scalar_prefetch = 0 : i64, scratch_operands = 1 : i64, tpu.core_type = #tpu.core_type<tc>, window_params = [{transform_indices = @transform_0, window_bounds = array<i64: 8, 32>}, {transform_indices = @transform_1, window_bounds = array<i64: 8, 1>}, {transform_indices = @transform_2, window_bounds = array<i64: 1, 8, 128>}]} {
    %c0_i32 = arith.constant 0 : i32
    %0 = arith.cmpi eq, %arg1, %c0_i32 : i32
    %1 = arith.extui %0 : i1 to i32
    %c0_i32_0 = arith.constant 0 : i32
    %2 = arith.cmpi ne, %1, %c0_i32_0 : i32
    scf.if %2 {
      %cst_18 = arith.constant 0.000000e+00 : f32
      %41 = vector.broadcast %cst_18 : f32 to vector<8x1xf32>
      %c0_19 = arith.constant 0 : index
      %c0_20 = arith.constant 0 : index
      %42 = vector.load %arg5[%c0_19, %c0_20] : memref<8x1xf32, #tpu.memory_space<vmem>>, vector<8x1xf32>
      tpu.vector_store %arg5[%c0_19, %c0_20], %41 {strides = array<i32>} : memref<8x1xf32, #tpu.memory_space<vmem>>, vector<8x1xf32>,
    } else {
    }
    %c0 = arith.constant 0 : index
    %c0_1 = arith.constant 0 : index
    %3 = vector.load %arg2[%c0, %c0_1] : memref<8x32xf32, #tpu.memory_space<vmem>>, vector<8x32xf32>
    %c0_2 = arith.constant 0 : index
    %c0_3 = arith.constant 0 : index
    %4 = vector.load %arg3[%c0_2, %c0_3] : memref<8x1xi32, #tpu.memory_space<vmem>>, vector<8x1xi32>
    %cst = arith.constant dense<0xFF800000> : vector<8xf32>
    %5 = vector.multi_reduction <maximumf>, %3, %cst [1] : vector<8x32xf32> to vector<8xf32>
    %6 = vector.shape_cast %5 : vector<8xf32> to vector<8x1xf32>
    %7 = vector.broadcast %6 : vector<8x1xf32> to vector<8x32xf32>
    %8 = arith.subf %3, %7 : vector<8x32xf32>
    %9 = math.exp %8 : vector<8x32xf32>
    %cst_4 = arith.constant dense<0.000000e+00> : vector<8xf32>
    %10 = vector.multi_reduction <add>, %9, %cst_4 [1] : vector<8x32xf32> to vector<8xf32>
    %11 = vector.shape_cast %10 : vector<8xf32> to vector<8x1xf32>
    %12 = math.log %11 : vector<8x1xf32>
    %cst_5 = arith.constant dense<0.000000e+00> : vector<8xf32>
    %13 = vector.multi_reduction <add>, %3, %cst_5 [1] : vector<8x32xf32> to vector<8xf32>
    %14 = vector.shape_cast %13 : vector<8xf32> to vector<8x1xf32>
    %15 = tpu.iota {dimensions = array<i32: 1>} : vector<1x32xi32>
    %16 = vector.broadcast %15 : vector<1x32xi32> to vector<8x32xi32>
    %17 = vector.broadcast %4 : vector<8x1xi32> to vector<8x32xi32>
    %18 = arith.cmpi eq, %16, %17 : vector<8x32xi32>
    %cst_6 = arith.constant 0.000000e+00 : f32
    %19 = vector.broadcast %cst_6 : f32 to vector<8x32xf32>
    %20 = arith.select %18, %3, %19 : vector<8x32xi1>, vector<8x32xf32>
    %cst_7 = arith.constant dense<0.000000e+00> : vector<8xf32>
    %21 = vector.multi_reduction <add>, %20, %cst_7 [1] : vector<8x32xf32> to vector<8xf32>
    %22 = vector.shape_cast %21 : vector<8xf32> to vector<8x1xf32>
    %23 = arith.subf %22, %6 : vector<8x1xf32>
    %24 = arith.subf %23, %12 : vector<8x1xf32>
    %25 = arith.addf %6, %12 : vector<8x1xf32>
    %cst_8 = arith.constant 3.200000e+01 : f32
    %26 = vector.broadcast %cst_8 : f32 to vector<8x1xf32>
    %27 = arith.mulf %26, %25 : vector<8x1xf32>
    %28 = arith.subf %14, %27 : vector<8x1xf32>
    %cst_9 = arith.constant 0.000000e+00 : f32
    %cst_10 = arith.constant 0.896774172 : f32
    %29 = arith.subf %cst_9, %cst_10 : f32
    %30 = vector.broadcast %29 : f32 to vector<8x1xf32>
    %31 = arith.mulf %30, %24 : vector<8x1xf32>
    %cst_11 = arith.constant 0.0032258064 : f32
    %32 = vector.broadcast %cst_11 : f32 to vector<8x1xf32>
    %33 = arith.mulf %32, %28 : vector<8x1xf32>
    %34 = arith.subf %31, %33 : vector<8x1xf32>
    %c0_12 = arith.constant 0 : index
    %c0_13 = arith.constant 0 : index
    %35 = vector.load %arg5[%c0_12, %c0_13] : memref<8x1xf32, #tpu.memory_space<vmem>>, vector<8x1xf32>
    %36 = arith.addf %35, %34 : vector<8x1xf32>
    %c0_14 = arith.constant 0 : index
    %c0_15 = arith.constant 0 : index
    %37 = vector.load %arg5[%c0_14, %c0_15] : memref<8x1xf32, #tpu.memory_space<vmem>>, vector<8x1xf32>
    tpu.vector_store %arg5[%c0_14, %c0_15], %36 {strides = array<i32>} : memref<8x1xf32, #tpu.memory_space<vmem>>, vector<8x1xf32>,
    %c0_i32_16 = arith.constant 0 : i32
    %38 = arith.cmpi eq, %arg1, %c0_i32_16 : i32
    %39 = arith.extui %38 : i1 to i32
    %c0_i32_17 = arith.constant 0 : i32
    %40 = arith.cmpi ne, %39, %c0_i32_17 : i32
    scf.if %40 {
      %c0_18 = arith.constant 0 : index
      %c0_19 = arith.constant 0 : index
      %41 = vector.load %arg5[%c0_18, %c0_19] : memref<8x1xf32, #tpu.memory_space<vmem>>, vector<8x1xf32>
      %42 = vector.shape_cast %41 : vector<8x1xf32> to vector<1x8x1xf32>
      %cst_20 = arith.constant dense<0.000000e+00> : vector<1xf32>
      %43 = vector.multi_reduction <add>, %42, %cst_20 [1, 2] : vector<1x8x1xf32> to vector<1xf32>
      %44 = vector.shape_cast %43 : vector<1xf32> to vector<1x1x1xf32>
      %45 = vector.extract %44[0, 0, 0] : f32 from vector<1x1x1xf32>
      %46 = vector.broadcast %45 : f32 to vector<1x8x128xf32>
      %c0_21 = arith.constant 0 : index
      %c0_22 = arith.constant 0 : index
      %c0_23 = arith.constant 0 : index
      %47 = vector.load %arg4[%c0_21, %c0_22, %c0_23] : memref<1x8x128xf32, #tpu.memory_space<vmem>>, vector<1x8x128xf32>
      tpu.vector_store %arg4[%c0_21, %c0_22, %c0_23], %46 {strides = array<i32>} : memref<1x8x128xf32, #tpu.memory_space<vmem>>, vector<1x8x128xf32>,
    } else {
    }
    return
  }
  func.func @transform_0(%arg0: i32, %arg1: i32) -> (i32, i32) {
    %c1_i32 = arith.constant 1 : i32
    %0 = arith.muli %arg0, %c1_i32 : i32
    %1 = arith.addi %0, %arg1 : i32
    %c0_i32 = arith.constant 0 : i32
    %c0_i32_0 = arith.constant 0 : i32
    return %1, %c0_i32 : i32, i32
  }
  func.func @transform_1(%arg0: i32, %arg1: i32) -> (i32, i32) {
    %c1_i32 = arith.constant 1 : i32
    %0 = arith.muli %arg0, %c1_i32 : i32
    %1 = arith.addi %0, %arg1 : i32
    %c0_i32 = arith.constant 0 : i32
    %c0_i32_0 = arith.constant 0 : i32
    return %1, %c0_i32 : i32, i32
  }
  func.func @transform_2(%arg0: i32, %arg1: i32) -> (i32, i32, i32) {
    %c0_i32 = arith.constant 0 : i32
    %c0_i32_0 = arith.constant 0 : i32
    %c0_i32_1 = arith.constant 0 : i32
    return %arg0, %c0_i32, %c0_i32_0 : i32, i32, i32
  }
}

</mosaic_0001>

<llo_original>
// kernel: tpu_custom_call.1
$region0: #{tpu_custom_call.1}
  #allocation0 [shape = 'u32[]', space=smem, size = 0x4, offset = 0x4, fixed_abs, tag = 'smem constant byte address 0x4 - core index']
  #allocation1 [shape = 'u32[72,128]{1,0:T(1,128)}', space=vmem, size = 0x9000, scoped, tag = 'internal scratch']
  #allocation2 [shape = 'f32[8,1]{1,0:T(8,128)}', space=vmem, size = 0x1000, scoped, tag = 'scratch operand']
  %s0 = inlined_call_operand.vmem [shape: f32[8,32], index: 0, kind: input, shape index: {}]
  %s1 = inlined_call_operand.vmem [shape: s32[8,1], index: 1, kind: input, shape index: {}]
  %s2 = inlined_call_operand.hbm [shape: f32[1,8,128], index: 2, kind: output, shape index: {}]
  %s3 = sld [smem:[#allocation0]]
  $region26: #{tpu_custom_call.1} parent=0
    _
  %s5 = ssub.s32 1, %s3
  %s6 = scalar_select 0, %s5, %s3
  $region1: #{tpu_custom_call.1} parent=0
    #allocation3 [shape = 'u8[4096]{0}', space=vmem, size = 0x1000, scoped, tag = 'output window, operand 0, single buffered']
    #allocation4 [shape = 's32[1]{0}', space=sflag, size = 0x4, scoped, tag = 'scoped memory for tpu_custom_call.1']
    %7 = vsyncpa [#allocation4], 0
    // Predicated region
    $region2: #{tpu_custom_call.1} parent=1 // pred_check
      _
    $region3: #{tpu_custom_call.1} parent=1 // pred_check_branch
      %9 = sbr.rel (0) target = $region5
    $region4: #{tpu_custom_call.1} parent=1 // pred_region
      %s10 = sadd.s32 0, 0
      %p11 = scmp.lt.s32.totalorder %s10, 0
      %s12 = scalar_select %p11, %s10, 0
      %s13 = smul.addr %s12, 8
      %s14 = scalar_lea.vmem %s0, %s13
      %s15 = sadd.s32 0, 0
    $region5: #{tpu_custom_call.1} parent=1 // pred_fallthru
      _
    // Predicated region
    $region6: #{tpu_custom_call.1} parent=1 // pred_check
      _
    $region7: #{tpu_custom_call.1} parent=1 // pred_check_branch
      %17 = sbr.rel (0) target = $region9
    $region8: #{tpu_custom_call.1} parent=1 // pred_region
      %s18 = sadd.s32 0, 0
      %p19 = scmp.lt.s32.totalorder %s18, 0
      %s20 = scalar_select %p19, %s18, 0
      %s21 = smul.addr %s20, 8
      %s22 = scalar_lea.vmem %s1, %s21
      %s23 = sadd.s32 0, 0
    $region9: #{tpu_custom_call.1} parent=1 // pred_fallthru
      _
    %s24 = sadd.s32 0, 0
    %p25 = scmp.lt.s32.totalorder %s24, 0
    %s26 = scalar_select %p25, %s24, 0
    %s27 = smul.addr %s26, 8
    %s28 = scalar_lea.vmem %s0, %s27
    %s29 = sadd.s32 0, 0
    %p30 = scmp.lt.s32.totalorder %s29, 0
    %s31 = scalar_select %p30, %s29, 0
    %s32 = smul.addr %s31, 8
    %s33 = scalar_lea.vmem %s1, %s32
    %s34 = sadd.s32 0, 0
    %p35 = scmp.lt.s32.totalorder %s34, 0
    %s36 = scalar_select %p35, %s34, 0
    %s37 = smul.addr %s36, 8
    %s38 = scalar_lea.vmem %s0, %s37
    %s39 = sadd.s32 0, 0
    %s40 = sadd.s32 0, 0
    %p41 = scmp.lt.s32.totalorder %s40, 0
    %s42 = scalar_select %p41, %s40, 0
    %s43 = smul.addr %s42, 8
    %s44 = scalar_lea.vmem %s1, %s43
    %s45 = sadd.s32 0, 0
    %p46 = scmp.eq.s32.totalorder 0, 0
    // Predicated region
    $region10: #{tpu_custom_call.1} parent=1 // pred_check
      %p47 = pneg %p46
    $region11: #{tpu_custom_call.1} parent=1 // pred_check_branch
      %49 = sbr.rel (%p47) target = $region13
    $region12: #{tpu_custom_call.1} parent=1 // pred_region
      %vm50 = vcmask 7168
      %51 = vst.msk [vmem:[#allocation2] sm:$0xff] %vm50, 0.0
    $region13: #{tpu_custom_call.1} parent=1 // pred_fallthru
      _
    %v52 = vld [vmem:[%s38] sm:$0xff]
    %v53 = vld [vmem:[%s44] sm:$0xff]
    %vm54 = vcmask 261120
    %v55 = vsel %vm54, %v52, -inf
    %56 = vmax.xlane.f32.xlu0 %v55
    %v57 = vpop.xlane.xlu0 %56
    %v58 = vsub.f32 %v52, %v57
    %v59 = vmul.f32 %v58, 1.442695
    %v60 = vpow.pop %v59
    %v61 = vsel %vm54, %v60, 0.0
    %62 = vadd.xlane.f32.xlu0 %v61
    %v63 = vpop.xlane.xlu0 %62
    %v64 = vlog2.pop %v63
    %v65 = vmul.f32 %v64, 0.6931472
    %v66 = vsel %vm54, %v52, 0.0
    %67 = vadd.xlane.f32.xlu0 %v66
    %v68 = vpop.xlane.xlu0 %67
    %v69 = vlaneseq
    %v70 = vand.u32 %v69, 127
    %71 = vset.pattern.permute.xlu0 0
    %72 = vperm.xlu0 %71, %v53
    %v73 = vpop.permute.xlu0 %72
    %vm74 = vcmp.eq.s32.totalorder %v70, %v73
    %v75 = vsel %vm74, %v52, 0.0
    %v76 = vsel %vm54, %v75, 0.0
    %77 = vadd.xlane.f32.xlu0 %v76
    %v78 = vpop.xlane.xlu0 %77
    %v79 = vsub.f32 %v78, %v57
    %v80 = vsub.f32 %v79, %v65
    %v81 = vadd.f32 %v57, %v65
    %v82 = vmul.f32 %v81, 32.0
    %v83 = vsub.f32 %v68, %v82
    %v84 = vmul.f32 %v80, -0.8967742
    %v85 = vmul.f32 %v83, 0.0032258064
    %v86 = vsub.f32 %v84, %v85
    %v87 = vld [vmem:[#allocation2] sm:$0xff]
    %v88 = vadd.f32 %v87, %v86
    %vm89 = vcmask 7168
    %90 = vst.msk [vmem:[#allocation2] sm:$0xff] %vm89, %v88
    // Predicated region
    $region14: #{tpu_custom_call.1} parent=1 // pred_check
      %p91 = pneg %p46
    $region15: #{tpu_custom_call.1} parent=1 // pred_check_branch
      %93 = sbr.rel (%p91) target = $region17
    $region16: #{tpu_custom_call.1} parent=1 // pred_region
      %v94 = vld [vmem:[#allocation2] sm:$0xff]
      %v95 = vsel %vm89, %v94, 0.0
      %96 = vadd.xlane.f32.xlu0 %v95
      %v97 = vpop.xlane.xlu0 %96
      %v98 = vrot.slane %v97, 4
      %v99 = vadd.f32 %v97, %v98
      %v100 = vrot.slane %v99, 2
      %v101 = vadd.f32 %v99, %v100
      %v102 = vrot.slane %v101, 1
      %v103 = vadd.f32 %v101, %v102
      %s104 = vtos %v103
      %v105 = vstv %s104
      %106 = vst [vmem:[#allocation3] sm:$0xff] %v105
    $region17: #{tpu_custom_call.1} parent=1 // pred_fallthru
      _
    // Predicated region
    $region18: #{tpu_custom_call.1} parent=1 // pred_check
      _
    $region19: #{tpu_custom_call.1} parent=1 // pred_check_branch
      %108 = sbr.rel (0) target = $region21
    $region20: #{tpu_custom_call.1} parent=1 // pred_region
      %110 = vsyncadd [#allocation4], 0
      %s112 = sshll.u32 [#allocation3], 4
      %s113 = int_to_ptr.vmem [resolvable:$true] %s112
      %s114 = sshll.u32 %s2, 4
      %s115 = int_to_ptr.hbm [resolvable:$true] %s114
      %117 = dma.vmem_to_hbm [thread:$0]  %s113, 128, %s115, [#allocation4]
    $region21: #{tpu_custom_call.1} parent=1 // pred_fallthru
      _
    // Predicated region
    $region22: #{tpu_custom_call.1} parent=1 // pred_check
      _
    $region23: #{tpu_custom_call.1} parent=1 // pred_check_branch
      %119 = sbr.rel (0) target = $region25
    $region24: #{tpu_custom_call.1} parent=1 // pred_region
      %121 = dma.done [#allocation4], 128
    $region25: #{tpu_custom_call.1} parent=1 // pred_fallthru
      _
    %122 = vsyncpa [#allocation4], 1

</llo_original>
